<compile_context>
chip_gen: v7x
topology: tpu7x:2x2x1
jax: 0.10.0
libtpu: 0.0.40
codegen_flags: <defaults>
</compile_context>

<pallas_src>
import math
import jax
import jax.numpy as jnp
from jax.experimental import pallas as pl
from jax.experimental.pallas import tpu as pltpu

_EPS = 1e-12
# k = floor(4*acos(c)/pi) via monotone thresholds:  4*acos(c)/pi >= j  <=>  c <= cos(j*pi/4)
_T1 = math.cos(1.0 * math.pi / 4.0)
_T2 = math.cos(2.0 * math.pi / 4.0)
_T3 = math.cos(3.0 * math.pi / 4.0)
_T4 = math.cos(4.0 * math.pi / 4.0)


def _round_up(n, m):
    return ((n + m - 1) // m) * m


def _estimate_vmem(tb, tc, d, mm_isz, out_isz):
    # double-buffered weight + output tiles, double-buffered x tile, xn/xlen scratch
    return (2 * tc * d * mm_isz + 2 * tb * tc * out_isz
            + 2 * tb * d * 4 + tb * d * mm_isz + tb * 4)


def angle_linear_kernel(x_ref, w_ref, label_ref, lam_ref, out_ref, xn_ref, xlen_ref):
    j = pl.program_id(1)
    tc = out_ref.shape[1]

    # Normalize the x tile once per B-tile; it stays resident across the class (j) axis.
    @pl.when(j == 0)
    def _():
        x = x_ref[...].astype(jnp.float32)                                # (TB, D)
        xlen = jnp.sqrt(jnp.sum(x * x, axis=1, keepdims=True))            # (TB, 1)
        xlen_ref[...] = xlen
        xn_ref[...] = (x / jnp.maximum(xlen, _EPS)).astype(xn_ref.dtype)

    # cos = xn @ wn.T, contracting the feature axis directly (no in-kernel transpose).
    cos = jax.lax.dot_general(
        xn_ref[...], w_ref[...],
        dimension_numbers=(((1,), (1,)), ((), ())),
        preferred_element_type=jnp.float32)                               # (TB, TC)

    # psi(theta) for m=4: cos(4t) = 8c^4 - 8c^2 + 1, psi = (-1)^k cos(4t) - 2k
    c2 = cos * cos
    cos_m = 8.0 * c2 * c2 - 8.0 * c2 + 1.0
    k = ((cos <= _T1).astype(jnp.int32) + (cos <= _T2).astype(jnp.int32)
         + (cos <= _T3).astype(jnp.int32) + (cos <= _T4).astype(jnp.int32))
    kf = k.astype(jnp.float32)
    sign = 1.0 - 2.0 * jnp.bitwise_and(k, 1).astype(jnp.float32)          # (-1)^k
    psi = sign * cos_m - 2.0 * kf

    lam = lam_ref[0]
    col = jax.lax.broadcasted_iota(jnp.int32, cos.shape, 1) + j * tc      # global class index
    onehot = col == label_ref[...]                                        # (TB,1) -> (TB,TC)
    out = jnp.where(onehot, psi * lam + cos * (1.0 - lam), cos)
    out_ref[...] = (out * xlen_ref[...]).astype(out_ref.dtype)


def angle_linear(x, weight, label, lam=0.0, *, m=4, block_b=None, block_c=None,
                 matmul_dtype=None):
    """Pallas forward of AngleLinear (m=4).

    x:(B,D), weight:(C,D) (nn.Linear layout), label:(B,) int.
    matmul_dtype: dtype of the normalized weight/activation streams fed to the MXU
                  (e.g. jnp.bfloat16 halves weight HBM traffic; accumulation stays f32).
    """
    assert m == 4, "only m=4 (PhiKernel4) is implemented"
    B, D = x.shape
    C, D2 = weight.shape
    assert D == D2

    out_dtype = x.dtype
    if matmul_dtype is None:
        matmul_dtype = x.dtype

    # One-time weight L2-normalization hoisted out of the kernel (the PyTorch module
    # normalizes weight.data in forward; the kernel's renormalization was idempotent).
    w32 = weight.astype(jnp.float32)
    wn = w32 / jnp.maximum(jnp.linalg.norm(w32, axis=1, keepdims=True), _EPS)
    wn = wn.astype(matmul_dtype)

    # Tile sizes: TB multiple of 8 (sublanes), TC multiple of 128 (lane-dense stores).
    TB = block_b if block_b is not None else min(_round_up(B, 8), 128)
    TB = _round_up(TB, 8)
    TC = block_c if block_c is not None else min(_round_up(C, 128), 1024)
    TC = _round_up(TC, 128)
    mm_isz = jnp.dtype(matmul_dtype).itemsize
    out_isz = jnp.dtype(out_dtype).itemsize
    budget = 24 * 1024 * 1024  # comfortably inside v7x's 64 MiB VMEM (and v5e/v6e)
    while TC > 128 and _estimate_vmem(TB, TC, D, mm_isz, out_isz) > budget:
        TC = _round_up(TC // 2, 128)
    while TB > 8 and _estimate_vmem(TB, TC, D, mm_isz, out_isz) > budget:
        TB = _round_up(TB // 2, 8)
    # TODO(synk): for very large in_features, add an innermost "arbitrary" K grid axis with an
    # f32 VMEM accumulator (P3) instead of consuming the full D row per tile.

    # Pad B and C to tile multiples; zero rows/columns are harmless and sliced off below.
    Bp = _round_up(B, TB)
    Cp = _round_up(C, TC)
    xp = jnp.pad(x, ((0, Bp - B), (0, 0)))
    wnp = jnp.pad(wn, ((0, Cp - C), (0, 0)))
    labelp = jnp.pad(label.astype(jnp.int32), (0, Bp - B)).reshape(Bp, 1)
    lam_arr = jnp.asarray([lam], dtype=jnp.float32)

    grid = (Bp // TB, Cp // TC)

    out = pl.pallas_call(
        angle_linear_kernel,
        out_shape=jax.ShapeDtypeStruct((Bp, Cp), out_dtype),
        grid=grid,
        in_specs=[
            pl.BlockSpec((TB, D), lambda i, j: (i, 0)),          # x tile, resident across j
            pl.BlockSpec((TC, D), lambda i, j: (j, 0)),          # normalized weight, streamed
            pl.BlockSpec((TB, 1), lambda i, j: (i, 0)),          # labels for this B-tile
            pl.BlockSpec(memory_space=pltpu.MemorySpace.SMEM),   # lam scalar
        ],
        out_specs=pl.BlockSpec((TB, TC), lambda i, j: (i, j)),
        scratch_shapes=[
            pltpu.VMEM((TB, D), matmul_dtype),   # xn (normalized x), computed once per B-tile
            pltpu.VMEM((TB, 1), jnp.float32),    # xlen
        ],
        compiler_params=pltpu.CompilerParams(
            dimension_semantics=("parallel", "arbitrary"),
            vmem_limit_bytes=48 * 1024 * 1024,
        ),
    )(xp, wnp, labelp, lam_arr)

    return out[:B, :C]


def angle_linear_ref(x, weight, label, lam=0.0, matmul_dtype=None):
    """Pure-JAX reference (mirrors PhiKernel4.forward) for correctness checks."""
    x32 = x.astype(jnp.float32)
    w32 = weight.astype(jnp.float32)
    xlen = jnp.linalg.norm(x32, axis=1, keepdims=True)
    xn = x32 / jnp.maximum(xlen, _EPS)
    wn = w32 / jnp.maximum(jnp.linalg.norm(w32, axis=1, keepdims=True), _EPS)
    if matmul_dtype is not None:
        xn = xn.astype(matmul_dtype).astype(jnp.float32)
        wn = wn.astype(matmul_dtype).astype(jnp.float32)
    cos = xn @ wn.T
    cos_m = 8.0 * cos ** 4 - 8.0 * cos ** 2 + 1.0
    k = jnp.floor(4.0 * jnp.arccos(jnp.clip(cos, -1.0, 1.0)) / math.pi)
    psi = (-1.0) ** k * cos_m - 2.0 * k
    onehot = jax.nn.one_hot(label, weight.shape[0], dtype=bool)
    out = jnp.where(onehot, psi * lam + cos * (1.0 - lam), cos)
    return (out * xlen).astype(x.dtype)


if __name__ == "__main__":
    key = jax.random.PRNGKey(0)
    B, D, C = 37, 160, 777     # batch, in_features, out_features (non-aligned -> exercises padding)
    lam = 0.3                  # exercise the full margin path (module default is 0)

    kx, kw, kl = jax.random.split(key, 3)
    x = jax.random.normal(kx, (B, D), dtype=jnp.float32)
    # Deterministic kaiming_uniform_(a=1.0): bound = sqrt(6 / ((1+a^2)*fan_in)) = sqrt(3/fan_in)
    bound = math.sqrt(3.0 / D)
    weight = jax.random.uniform(kw, (C, D), minval=-bound, maxval=bound, dtype=jnp.float32)
    label = jax.random.randint(kl, (B,), 0, C, dtype=jnp.int32)

    # f32 path, small tiles forced so the (B-tiles, C-tiles) grid is actually multi-step (3 x 4).
    out = angle_linear(x, weight, label, lam, block_b=16, block_c=256)
    out = jax.block_until_ready(out)
    ref = angle_linear_ref(x, weight, label, lam)
    assert out.shape == (B, C) and out.dtype == x.dtype
    assert jnp.allclose(out, ref, atol=5e-4, rtol=5e-4), (
        "f32 mismatch vs reference, max abs err = %e" % float(jnp.max(jnp.abs(out - ref))))

    # bf16 weight/activation stream (halves the dominant HBM byte stream; f32 accumulation).
    out_bf = angle_linear(x, weight, label, lam, block_b=16, block_c=256,
                          matmul_dtype=jnp.bfloat16)
    out_bf = jax.block_until_ready(out_bf)
    ref_bf = angle_linear_ref(x, weight, label, lam, matmul_dtype=jnp.bfloat16)
    assert jnp.allclose(out_bf, ref_bf, atol=2e-2, rtol=2e-2), "bf16 mismatch vs reference"

    print("KERNEL_OK")
</pallas_src>

<mosaic_0001>
module attributes {stable_mosaic.version = 11 : i64} {
  func.func @angle_linear_kernel(%arg0: i32, %arg1: i32, %arg2: memref<16x160xf32, #tpu.memory_space<vmem>>, %arg3: memref<256x160xf32, #tpu.memory_space<vmem>>, %arg4: memref<16x1xi32, #tpu.memory_space<vmem>>, %arg5: memref<1xf32, #tpu.memory_space<smem>>, %arg6: memref<16x256xf32, #tpu.memory_space<vmem>>, %arg7: memref<16x160xf32, #tpu.memory_space<vmem>>, %arg8: memref<16x1xf32, #tpu.memory_space<vmem>>) attributes {dimension_semantics = [#tpu.dimension_semantics<parallel>, #tpu.dimension_semantics<arbitrary>], iteration_bounds = array<i64: 3, 4>, scalar_prefetch = 0 : i64, scratch_operands = 2 : i64, tpu.core_type = #tpu.core_type<tc>, window_params = [{transform_indices = @transform_0, window_bounds = array<i64: 16, 160>}, {transform_indices = @transform_1, window_bounds = array<i64: 256, 160>}, {transform_indices = @transform_2, window_bounds = array<i64: 16, 1>}, {transform_indices = @transform_3, window_bounds = array<i64: 1>}, {transform_indices = @transform_4, window_bounds = array<i64: 16, 256>}]} {
    %c0_i32 = arith.constant 0 : i32
    %0 = arith.cmpi eq, %arg1, %c0_i32 : i32
    %1 = arith.extui %0 : i1 to i32
    %c0_i32_0 = arith.constant 0 : i32
    %2 = arith.cmpi ne, %1, %c0_i32_0 : i32
    scf.if %2 {
      %c0_22 = arith.constant 0 : index
      %c0_23 = arith.constant 0 : index
      %61 = vector.load %arg2[%c0_22, %c0_23] : memref<16x160xf32, #tpu.memory_space<vmem>>, vector<16x160xf32>
      %62 = arith.mulf %61, %61 : vector<16x160xf32>
      %cst_24 = arith.constant dense<0.000000e+00> : vector<16xf32>
      %63 = vector.multi_reduction <add>, %62, %cst_24 [1] : vector<16x160xf32> to vector<16xf32>
      %64 = vector.shape_cast %63 : vector<16xf32> to vector<16x1xf32>
      %65 = math.sqrt %64 : vector<16x1xf32>
      %c0_25 = arith.constant 0 : index
      %c0_26 = arith.constant 0 : index
      %66 = vector.load %arg8[%c0_25, %c0_26] : memref<16x1xf32, #tpu.memory_space<vmem>>, vector<16x1xf32>
      tpu.vector_store %arg8[%c0_25, %c0_26], %65 {strides = array<i32>} : memref<16x1xf32, #tpu.memory_space<vmem>>, vector<16x1xf32>,
      %cst_27 = arith.constant 9.99999996E-13 : f32
      %67 = vector.broadcast %cst_27 : f32 to vector<16x1xf32>
      %68 = arith.maximumf %65, %67 : vector<16x1xf32>
      %69 = vector.broadcast %68 : vector<16x1xf32> to vector<16x160xf32>
      %70 = arith.divf %61, %69 : vector<16x160xf32>
      %c0_28 = arith.constant 0 : index
      %c0_29 = arith.constant 0 : index
      %71 = vector.load %arg7[%c0_28, %c0_29] : memref<16x160xf32, #tpu.memory_space<vmem>>, vector<16x160xf32>
      tpu.vector_store %arg7[%c0_28, %c0_29], %70 {strides = array<i32>} : memref<16x160xf32, #tpu.memory_space<vmem>>, vector<16x160xf32>,
    } else {
    }
    %c0 = arith.constant 0 : index
    %c0_1 = arith.constant 0 : index
    %3 = vector.load %arg7[%c0, %c0_1] : memref<16x160xf32, #tpu.memory_space<vmem>>, vector<16x160xf32>
    %c0_2 = arith.constant 0 : index
    %c0_3 = arith.constant 0 : index
    %4 = vector.load %arg3[%c0_2, %c0_3] : memref<256x160xf32, #tpu.memory_space<vmem>>, vector<256x160xf32>
    %cst = arith.constant dense<0.000000e+00> : vector<16x256xf32>
    %5 = tpu.matmul %3, %4, %cst {dimension_numbers = #tpu.dot_dimension_numbers<[1], [1], [0], [0], [0, 0, 1, 0], [], []>} : vector<16x160xf32>, vector<256x160xf32>, vector<16x256xf32> -> vector<16x256xf32>
    %6 = arith.mulf %5, %5 : vector<16x256xf32>
    %cst_4 = arith.constant 8.000000e+00 : f32
    %7 = vector.broadcast %cst_4 : f32 to vector<16x256xf32>
    %8 = arith.mulf %7, %6 : vector<16x256xf32>
    %9 = arith.mulf %8, %6 : vector<16x256xf32>
    %cst_5 = arith.constant 8.000000e+00 : f32
    %10 = vector.broadcast %cst_5 : f32 to vector<16x256xf32>
    %11 = arith.mulf %10, %6 : vector<16x256xf32>
    %12 = arith.subf %9, %11 : vector<16x256xf32>
    %cst_6 = arith.constant 1.000000e+00 : f32
    %13 = vector.broadcast %cst_6 : f32 to vector<16x256xf32>
    %14 = arith.addf %12, %13 : vector<16x256xf32>
    %cst_7 = arith.constant 0.707106769 : f32
    %15 = vector.broadcast %cst_7 : f32 to vector<16x256xf32>
    %16 = arith.cmpf ole, %5, %15 : vector<16x256xf32>
    %17 = arith.extui %16 : vector<16x256xi1> to vector<16x256xi32>
    %cst_8 = arith.constant 6.12323426E-17 : f32
    %18 = vector.broadcast %cst_8 : f32 to vector<16x256xf32>
    %19 = arith.cmpf ole, %5, %18 : vector<16x256xf32>
    %20 = arith.extui %19 : vector<16x256xi1> to vector<16x256xi32>
    %21 = arith.addi %17, %20 : vector<16x256xi32>
    %cst_9 = arith.constant -0.707106769 : f32
    %22 = vector.broadcast %cst_9 : f32 to vector<16x256xf32>
    %23 = arith.cmpf ole, %5, %22 : vector<16x256xf32>
    %24 = arith.extui %23 : vector<16x256xi1> to vector<16x256xi32>
    %25 = arith.addi %21, %24 : vector<16x256xi32>
    %cst_10 = arith.constant -1.000000e+00 : f32
    %26 = vector.broadcast %cst_10 : f32 to vector<16x256xf32>
    %27 = arith.cmpf ole, %5, %26 : vector<16x256xf32>
    %28 = arith.extui %27 : vector<16x256xi1> to vector<16x256xi32>
    %29 = arith.addi %25, %28 : vector<16x256xi32>
    %30 = arith.sitofp %29 : vector<16x256xi32> to vector<16x256xf32>
    %c1_i32 = arith.constant 1 : i32
    %31 = vector.broadcast %c1_i32 : i32 to vector<16x256xi32>
    %32 = arith.andi %29, %31 : vector<16x256xi32>
    %33 = arith.sitofp %32 : vector<16x256xi32> to vector<16x256xf32>
    %cst_11 = arith.constant 2.000000e+00 : f32
    %34 = vector.broadcast %cst_11 : f32 to vector<16x256xf32>
    %35 = arith.mulf %34, %33 : vector<16x256xf32>
    %cst_12 = arith.constant 1.000000e+00 : f32
    %36 = vector.broadcast %cst_12 : f32 to vector<16x256xf32>
    %37 = arith.subf %36, %35 : vector<16x256xf32>
    %38 = arith.mulf %37, %14 : vector<16x256xf32>
    %cst_13 = arith.constant 2.000000e+00 : f32
    %39 = vector.broadcast %cst_13 : f32 to vector<16x256xf32>
    %40 = arith.mulf %39, %30 : vector<16x256xf32>
    %41 = arith.subf %38, %40 : vector<16x256xf32>
    %c0_14 = arith.constant 0 : index
    %42 = memref.load %arg5[%c0_14] : memref<1xf32, #tpu.memory_space<smem>>
    %43 = tpu.iota {dimensions = array<i32: 1>} : vector<16x256xi32>
    %c256_i32 = arith.constant 256 : i32
    %44 = arith.muli %arg1, %c256_i32 : i32
    %45 = vector.broadcast %44 : i32 to vector<16x256xi32>
    %46 = arith.addi %43, %45 : vector<16x256xi32>
    %c0_15 = arith.constant 0 : index
    %c0_16 = arith.constant 0 : index
    %47 = vector.load %arg4[%c0_15, %c0_16] : memref<16x1xi32, #tpu.memory_space<vmem>>, vector<16x1xi32>
    %48 = vector.broadcast %47 : vector<16x1xi32> to vector<16x256xi32>
    %49 = arith.cmpi eq, %46, %48 : vector<16x256xi32>
    %50 = vector.broadcast %42 : f32 to vector<16x256xf32>
    %51 = arith.mulf %41, %50 : vector<16x256xf32>
    %cst_17 = arith.constant 1.000000e+00 : f32
    %52 = arith.subf %cst_17, %42 : f32
    %53 = vector.broadcast %52 : f32 to vector<16x256xf32>
    %54 = arith.mulf %5, %53 : vector<16x256xf32>
    %55 = arith.addf %51, %54 : vector<16x256xf32>
    %56 = arith.select %49, %55, %5 : vector<16x256xi1>, vector<16x256xf32>
    %c0_18 = arith.constant 0 : index
    %c0_19 = arith.constant 0 : index
    %57 = vector.load %arg8[%c0_18, %c0_19] : memref<16x1xf32, #tpu.memory_space<vmem>>, vector<16x1xf32>
    %58 = vector.broadcast %57 : vector<16x1xf32> to vector<16x256xf32>
    %59 = arith.mulf %56, %58 : vector<16x256xf32>
    %c0_20 = arith.constant 0 : index
    %c0_21 = arith.constant 0 : index
    %60 = vector.load %arg6[%c0_20, %c0_21] : memref<16x256xf32, #tpu.memory_space<vmem>>, vector<16x256xf32>
    tpu.vector_store %arg6[%c0_20, %c0_21], %59 {strides = array<i32>} : memref<16x256xf32, #tpu.memory_space<vmem>>, vector<16x256xf32>,
    return
  }
  func.func @transform_0(%arg0: i32, %arg1: i32) -> (i32, i32) {
    %c0_i32 = arith.constant 0 : i32
    %c0_i32_0 = arith.constant 0 : i32
    return %arg0, %c0_i32 : i32, i32
  }
  func.func @transform_1(%arg0: i32, %arg1: i32) -> (i32, i32) {
    %c0_i32 = arith.constant 0 : i32
    %c0_i32_0 = arith.constant 0 : i32
    return %arg1, %c0_i32 : i32, i32
  }
  func.func @transform_2(%arg0: i32, %arg1: i32) -> (i32, i32) {
    %c0_i32 = arith.constant 0 : i32
    %c0_i32_0 = arith.constant 0 : i32
    return %arg0, %c0_i32 : i32, i32
  }
  func.func @transform_3(%arg0: i32, %arg1: i32) -> i32 {
    %c0_i32 = arith.constant 0 : i32
    %c0_i32_0 = arith.constant 0 : i32
    return %c0_i32 : i32
  }
  func.func @transform_4(%arg0: i32, %arg1: i32) -> (i32, i32) {
    %c0_i32 = arith.constant 0 : i32
    return %arg0, %arg1 : i32, i32
  }
}

</mosaic_0001>

<llo_original>
// kernel: tpu_custom_call.1
$region0: #{tpu_custom_call.1}
  #allocation0 [shape = 'u32[]', space=smem, size = 0x4, offset = 0x4, fixed_abs, tag = 'smem constant byte address 0x4 - core index']
  #allocation1 [shape = 'u32[144,128]{1,0:T(1,128)}', space=vmem, size = 0x12000, scoped, tag = 'internal scratch']
  #allocation2 [shape = 'f32[16,160]{1,0:T(8,128)}', space=vmem, size = 0x4000, scoped, tag = 'scratch operand']
  #allocation3 [shape = 'f32[16,1]{1,0:T(8,128)}', space=vmem, size = 0x2000, scoped, tag = 'scratch operand']
  #allocation4 [shape = 'f32[1]{0:T(128)S(6)}', space=smem, size = 0x200, scoped, tag = 'scoped memory for tpu_custom_call.1']
  %s0 = inlined_call_operand.vmem [shape: f32[48,160], index: 0, kind: input, shape index: {}]
  %s1 = inlined_call_operand.vmem [shape: f32[1024,160], index: 1, kind: input, shape index: {}]
  %s2 = inlined_call_operand.vmem [shape: s32[48,1], index: 2, kind: input, shape index: {}]
  %s3 = inlined_call_operand.<no memory space> [shape: f32[1], index: 3, kind: input, shape index: {}]
  %s4 = inlined_call_operand.hbm [shape: f32[48,1024], index: 4, kind: output, shape index: {}]
  %s5 = sld [smem:[#allocation0]]
  $region53: #{tpu_custom_call.1} parent=0
    _
  %s7 = ssub.s32 1, %s5
  %s8 = scalar_select 0, %s7, %s5
  %9 = sst [smem:[#allocation4]] %s3
  $region1: #{tpu_custom_call.1} parent=0
    #allocation5 [shape = 'u8[32768]{0}', space=vmem, size = 0x8000, scoped, tag = 'output window, operand 0']
    #allocation6 [shape = 's32[2]{0}', space=sflag, size = 0x8, scoped, tag = 'scoped memory for tpu_custom_call.1']
    %10 = vsyncpa [#allocation6], 0
    %s11 = scalar_lea.sflag [#allocation6], 1
    %12 = vsyncpa %s11, 0
    loop: start=0, step=1, limit=14
    $region2: #{tpu_custom_call.1} parent=1 // loop_pre_header
      _
    $region3: #{tpu_custom_call.1} parent=1 // loop_header
      %s14 = sphi 0, %s18
      %p15 = scmp.ge.s32.totalorder %s14, 14
      %s21 = sphi 0, %s33
      %s22 = sphi 0, %s29
      %s23 = sphi 0, %s21
      %s24 = sphi 0, %s22
      %s25 = sphi 0, %s23
      %s26 = sphi 0, %s24
      %s36 = sphi 0, %s38
      %s39 = sphi 0, %s36
      %s40 = sphi 0, %s39
      %s56 = sphi 0, %s40
      %s62 = sphi 0, %s64
      %s65 = sphi 0, %s62
      %s66 = sphi 0, %s65
      %s82 = sphi 0, %s66
      %s88 = sphi 0, %s90
      %s91 = sphi 0, %s88
      %s92 = sphi 0, %s91
      %s108 = sphi 0, %s92
      %s112 = sphi 0, %s112
      %s114 = sphi 0, %s112
      %s115 = sphi 0, %s114
      %s129 = sphi 0, %s115
      %s137 = sphi 0, %s139
      %s140 = sphi 0, %s137
      %s141 = sphi 0, %s140
      %s157 = sphi 0, %s141
    $region4: #{tpu_custom_call.1} parent=1 // loop_header_branch
      %17 = sbr.rel (%p15) target = $region8
    $region5: #{tpu_custom_call.1} parent=1 // loop_body
      %s19 = ssub.s32 %s14, 1
      %s20 = ssub.s32 %s14, 2
      %s27 = sadd.s32 1, %s22
      %p28 = scmp.ge.s32.totalorder %s27, 4
      %s29 = scalar_select %p28, 0, %s27
      %s30 = sadd.s32 1, %s21
      %s31 = scalar_select %p28, %s30, %s21
      %p32 = scmp.ge.s32.totalorder %s31, 3
      %s33 = scalar_select %p32, 0, %s31
      %s34 = ssub.s32 %s21, %s33
      %p35 = scmp.eq.s32.totalorder %s34, 0
      %s37 = sadd.s32 %s36, 1
      %s38 = scalar_select %p35, %s36, %s37
      %p41 = pneg %p35
      %p42 = scmp.eq.s32.totalorder %s14, 11
      %p43 = por %p41, %p42
      %p44 = scmp.ne.s32.totalorder %s36, %s39
      %p45 = scmp.eq.s32.totalorder %s14, 0
      %p46 = por %p44, %p45
      %p47 = scmp.ne.s32.totalorder %s36, %s39
      %p48 = scmp.eq.s32.totalorder %s19, 11
      %p49 = por %p47, %p48
      %p50 = scmp.ne.s32.totalorder %s39, %s40
      %p51 = scmp.eq.s32.totalorder %s19, 0
      %p52 = por %p50, %p51
      %p53 = scmp.ne.s32.totalorder %s39, %s40
      %p54 = scmp.eq.s32.totalorder %s20, 11
      %p55 = por %p53, %p54
      %p57 = scmp.ne.s32.totalorder %s40, %s56
      %p58 = scmp.eq.s32.totalorder %s20, 0
      %p59 = por %p57, %p58
      %s60 = ssub.s32 %s22, %s29
      %p61 = scmp.eq.s32.totalorder %s60, 0
      %s63 = sadd.s32 %s62, 1
      %s64 = scalar_select %p61, %s62, %s63
      %p67 = pneg %p61
      %p68 = scmp.eq.s32.totalorder %s14, 11
      %p69 = por %p67, %p68
      %p70 = scmp.ne.s32.totalorder %s62, %s65
      %p71 = scmp.eq.s32.totalorder %s14, 0
      %p72 = por %p70, %p71
      %p73 = scmp.ne.s32.totalorder %s62, %s65
      %p74 = scmp.eq.s32.totalorder %s19, 11
      %p75 = por %p73, %p74
      %p76 = scmp.ne.s32.totalorder %s65, %s66
      %p77 = scmp.eq.s32.totalorder %s19, 0
      %p78 = por %p76, %p77
      %p79 = scmp.ne.s32.totalorder %s65, %s66
      %p80 = scmp.eq.s32.totalorder %s20, 11
      %p81 = por %p79, %p80
      %p83 = scmp.ne.s32.totalorder %s66, %s82
      %p84 = scmp.eq.s32.totalorder %s20, 0
      %p85 = por %p83, %p84
      %s86 = ssub.s32 %s21, %s33
      %p87 = scmp.eq.s32.totalorder %s86, 0
      %s89 = sadd.s32 %s88, 1
      %s90 = scalar_select %p87, %s88, %s89
      %p93 = pneg %p87
      %p94 = scmp.eq.s32.totalorder %s14, 11
      %p95 = por %p93, %p94
      %p96 = scmp.ne.s32.totalorder %s88, %s91
      %p97 = scmp.eq.s32.totalorder %s14, 0
      %p98 = por %p96, %p97
      %p99 = scmp.ne.s32.totalorder %s88, %s91
      %p100 = scmp.eq.s32.totalorder %s19, 11
      %p101 = por %p99, %p100
      %p102 = scmp.ne.s32.totalorder %s91, %s92
      %p103 = scmp.eq.s32.totalorder %s19, 0
      %p104 = por %p102, %p103
      %p105 = scmp.ne.s32.totalorder %s91, %s92
      %p106 = scmp.eq.s32.totalorder %s20, 11
      %p107 = por %p105, %p106
      %p109 = scmp.ne.s32.totalorder %s92, %s108
      %p110 = scmp.eq.s32.totalorder %s20, 0
      %p111 = por %p109, %p110
      %s113 = sadd.s32 %s112, 1
      %p116 = scmp.eq.s32.totalorder %s14, 11
      %p117 = scmp.ne.s32.totalorder %s112, %s114
      %p118 = scmp.eq.s32.totalorder %s14, 0
      %p119 = por %p117, %p118
      %p120 = scmp.ne.s32.totalorder %s112, %s114
      %p121 = scmp.eq.s32.totalorder %s19, 11
      %p122 = por %p120, %p121
      %p123 = scmp.ne.s32.totalorder %s114, %s115
      %p124 = scmp.eq.s32.totalorder %s19, 0
      %p125 = por %p123, %p124
      %p126 = scmp.ne.s32.totalorder %s114, %s115
      %p127 = scmp.eq.s32.totalorder %s20, 11
      %p128 = por %p126, %p127
      %p130 = scmp.ne.s32.totalorder %s115, %s129
      %p131 = scmp.eq.s32.totalorder %s20, 0
      %p132 = por %p130, %p131
      %s133 = ssub.s32 %s21, %s33
      %s134 = ssub.s32 %s22, %s29
      %s135 = sor.u32 %s133, %s134
      %p136 = scmp.eq.s32.totalorder %s135, 0
      %s138 = sadd.s32 %s137, 1
      %s139 = scalar_select %p136, %s137, %s138
      %p142 = pneg %p136
      %p143 = scmp.eq.s32.totalorder %s14, 11
      %p144 = por %p142, %p143
      %p145 = scmp.ne.s32.totalorder %s137, %s140
      %p146 = scmp.eq.s32.totalorder %s14, 0
      %p147 = por %p145, %p146
      %p148 = scmp.ne.s32.totalorder %s137, %s140
      %p149 = scmp.eq.s32.totalorder %s19, 11
      %p150 = por %p148, %p149
      %p151 = scmp.ne.s32.totalorder %s140, %s141
      %p152 = scmp.eq.s32.totalorder %s19, 0
      %p153 = por %p151, %p152
      %p154 = scmp.ne.s32.totalorder %s140, %s141
      %p155 = scmp.eq.s32.totalorder %s20, 11
      %p156 = por %p154, %p155
      %p158 = scmp.ne.s32.totalorder %s141, %s157
      %p159 = scmp.eq.s32.totalorder %s20, 0
      %p160 = por %p158, %p159
      %p161 = scmp.le.s32.totalorder 1, %s14
      %p162 = scmp.lt.s32.totalorder %s14, 13
      %p163 = pnand %p161, %p162
      %p164 = pneg %p163
      // Predicated region
      $region9: #{tpu_custom_call.1} parent=5 // pred_check
        _
      $region10: #{tpu_custom_call.1} parent=5 // pred_check_branch
        %166 = sbr.rel (%p163) target = $region12
      $region11: #{tpu_custom_call.1} parent=5 // pred_region
        %s167 = ssub.s32 %s14, 1
        // Predicated region
        $region13: #{tpu_custom_call.1} parent=11 // pred_check
          %p168 = pneg %p125
        $region14: #{tpu_custom_call.1} parent=11 // pred_check_branch
          %170 = sbr.rel (%p168) target = $region16
        $region15: #{tpu_custom_call.1} parent=11 // pred_region
          _
        $region16: #{tpu_custom_call.1} parent=11 // pred_fallthru
          _
      $region12: #{tpu_custom_call.1} parent=5 // pred_fallthru
        _
      %p171 = scmp.lt.s32.totalorder %s14, 12
      // Predicated region
      $region17: #{tpu_custom_call.1} parent=5 // pred_check
        %p172 = pneg %p171
      $region18: #{tpu_custom_call.1} parent=5 // pred_check_branch
        %174 = sbr.rel (%p172) target = $region20
      $region19: #{tpu_custom_call.1} parent=5 // pred_region
        // Predicated region
        $region21: #{tpu_custom_call.1} parent=19 // pred_check
          %p175 = pneg %p46
        $region22: #{tpu_custom_call.1} parent=19 // pred_check_branch
          %177 = sbr.rel (%p175) target = $region24
        $region23: #{tpu_custom_call.1} parent=19 // pred_region
          %s178 = smul.u32 2, %s21
          %p179 = scmp.lt.s32.totalorder %s178, 5
          %s180 = scalar_select %p179, %s178, 5
          %s181 = smul.addr %s180, 2
          %s182 = smul.addr %s181, 8
          %s183 = scalar_lea.vmem %s0, %s182
          %s184 = smul.u32 2, %s21
        $region24: #{tpu_custom_call.1} parent=19 // pred_fallthru
          _
        // Predicated region
        $region25: #{tpu_custom_call.1} parent=19 // pred_check
          %p185 = pneg %p72
        $region26: #{tpu_custom_call.1} parent=19 // pred_check_branch
          %187 = sbr.rel (%p185) target = $region28
        $region27: #{tpu_custom_call.1} parent=19 // pred_region
          %s188 = smul.u32 32, %s22
          %p189 = scmp.lt.s32.totalorder %s188, 127
          %s190 = scalar_select %p189, %s188, 127
          %s191 = smul.addr %s190, 2
          %s192 = smul.addr %s191, 8
          %s193 = scalar_lea.vmem %s1, %s192
          %s194 = smul.u32 32, %s22
        $region28: #{tpu_custom_call.1} parent=19 // pred_fallthru
          _
        // Predicated region
        $region29: #{tpu_custom_call.1} parent=19 // pred_check
          %p195 = pneg %p98
        $region30: #{tpu_custom_call.1} parent=19 // pred_check_branch
          %197 = sbr.rel (%p195) target = $region32
        $region31: #{tpu_custom_call.1} parent=19 // pred_region
          %s198 = smul.u32 2, %s21
          %p199 = scmp.lt.s32.totalorder %s198, 5
          %s200 = scalar_select %p199, %s198, 5
          %s201 = smul.addr %s200, 8
          %s202 = scalar_lea.vmem %s2, %s201
          %s203 = smul.u32 2, %s21
        $region32: #{tpu_custom_call.1} parent=19 // pred_fallthru
          _
      $region20: #{tpu_custom_call.1} parent=5 // pred_fallthru
        _
      %p204 = scmp.le.s32.totalorder 1, %s14
      %p205 = scmp.lt.s32.totalorder %s14, 13
      %p206 = pnand %p204, %p205
      %p207 = pneg %p206
      // Predicated region
      $region33: #{tpu_custom_call.1} parent=5 // pred_check
        _
      $region34: #{tpu_custom_call.1} parent=5 // pred_check_branch
        %209 = sbr.rel (%p206) target = $region36
      $region35: #{tpu_custom_call.1} parent=5 // pred_region
        %s210 = ssub.s32 %s14, 1
        %s211 = smul.u32 2, %s23
        %p212 = scmp.lt.s32.totalorder %s211, 5
        %s213 = scalar_select %p212, %s211, 5
        %s214 = smul.addr %s213, 2
        %s215 = smul.addr %s214, 8
        %s216 = scalar_lea.vmem %s0, %s215
        %p217 = pneg %p52
        %p218 = pneg %p49
        %s219 = smul.u32 32, %s24
        %p220 = scmp.lt.s32.totalorder %s219, 127
        %s221 = scalar_select %p220, %s219, 127
        %s222 = smul.addr %s221, 2
        %s223 = smul.addr %s222, 8
        %s224 = scalar_lea.vmem %s1, %s223
        %p225 = pneg %p78
        %p226 = pneg %p75
        %s227 = smul.u32 2, %s23
        %p228 = scmp.lt.s32.totalorder %s227, 5
        %s229 = scalar_select %p228, %s227, 5
        %s230 = smul.addr %s229, 8
        %s231 = scalar_lea.vmem %s2, %s230
        %p232 = pneg %p104
        %p233 = pneg %p101
        %p234 = pneg %p125
        %p235 = pneg %p122
        %p236 = pneg %p153
        %p237 = pneg %p150
        %s238 = sand.u32 %s140, 1
        %s239 = scalar_lea.sflag [#allocation6], %s238
        %s240 = sand.u32 %s140, 1
        %s241 = smul.addr %s240, 32
        %s242 = scalar_lea.vmem [#allocation5], %s241
        %s243 = smul.u32 2, %s23
        %p244 = scmp.lt.s32.totalorder %s243, 5
        %s245 = scalar_select %p244, %s243, 5
        %s246 = smul.addr %s245, 2
        %s247 = smul.addr %s246, 8
        %s248 = scalar_lea.vmem %s0, %s247
        %s249 = smul.u32 2, %s23
        %s250 = smul.u32 32, %s24
        %p251 = scmp.lt.s32.totalorder %s250, 127
        %s252 = scalar_select %p251, %s250, 127
        %s253 = smul.addr %s252, 2
        %s254 = smul.addr %s253, 8
        %s255 = scalar_lea.vmem %s1, %s254
        %s256 = smul.u32 32, %s24
        %s257 = smul.u32 2, %s23
        %p258 = scmp.lt.s32.totalorder %s257, 5
        %s259 = scalar_select %p258, %s257, 5
        %s260 = smul.addr %s259, 8
        %s261 = scalar_lea.vmem %s2, %s260
        %s262 = smul.u32 2, %s23
        %s263 = smul.u32 2, %s23
        %s264 = smul.u32 2, %s24
        %p265 = scmp.eq.s32.totalorder %s24, 0
        // Predicated region
        $region37: #{tpu_custom_call.1} parent=35 // pred_check
          %p266 = pneg %p265
        $region38: #{tpu_custom_call.1} parent=35 // pred_check_branch
          %268 = sbr.rel (%p266) target = $region40
        $region39: #{tpu_custom_call.1} parent=35 // pred_region
          %v269 = vld [vmem:[%s248] sm:$0xff]
          %v270 = vld [vmem:[%s248 + $0x8] sm:$0xff]
          %v271 = vld [vmem:[%s248 + $0x10] sm:$0xff]
          %v272 = vld [vmem:[%s248 + $0x18] sm:$0xff]
          %v273 = vmul.f32 %v269, %v269
          %v274 = vmul.f32 %v270, %v270
          %v275 = vmul.f32 %v271, %v271
          %v276 = vmul.f32 %v272, %v272
          %vm277 = vcmask 261120
          %v278 = vsel %vm277, %v274, 0.0
          %v279 = vadd.f32 %v273, %v278
          %280 = vadd.xlane.f32.xlu0 %v279
          %v281 = vpop.xlane.xlu0 %280
          %v282 = vsel %vm277, %v276, 0.0
          %v283 = vadd.f32 %v275, %v282
          %284 = vadd.xlane.f32.xlu0 %v283
          %v285 = vpop.xlane.xlu0 %284
          %v286 = vrsqrt.pop %v281
          %v287 = vmul.f32 %v281, %v286
          %vm288 = vcmp.eq.f32.partialorder %v281, inf
          %v289 = vsel %vm288, %v281, %v287
          %vm290 = vcmp.eq.f32.partialorder %v281, 0.0
          %v291 = vand.u32 %v281, 2147483648
          %v292 = vsel %vm290, %v291, %v289
          %v293 = vrsqrt.pop %v285
          %v294 = vmul.f32 %v285, %v293
          %vm295 = vcmp.eq.f32.partialorder %v285, inf
          %v296 = vsel %vm295, %v285, %v294
          %vm297 = vcmp.eq.f32.partialorder %v285, 0.0
          %v298 = vand.u32 %v285, 2147483648
          %v299 = vsel %vm297, %v298, %v296
          %vm300 = vcmask 7168
          %301 = vst.msk [vmem:[#allocation3] sm:$0xff] %vm300, %v292
          %302 = vst.msk [vmem:[#allocation3 + $0x8] sm:$0xff] %vm300, %v299
          %v303 = vmax.f32 %v292, 1e-12
          %v304 = vmax.f32 %v299, 1e-12
          %v305 = vrcp.pop %v303
          %v306 = vmul.f32 %v269, %v305
          %v307 = vmul.f32 %v270, %v305
          %v308 = vrcp.pop %v304
          %v309 = vmul.f32 %v271, %v308
          %v310 = vmul.f32 %v272, %v308
          %311 = vst [vmem:[#allocation2] sm:$0xff] %v306
          %312 = vst.msk [vmem:[#allocation2 + $0x8] sm:$0xff] %vm277, %v307
          %313 = vst [vmem:[#allocation2 + $0x10] sm:$0xff] %v309
          %314 = vst.msk [vmem:[#allocation2 + $0x18] sm:$0xff] %vm277, %v310
        $region40: #{tpu_custom_call.1} parent=35 // pred_fallthru
          _
        %v315 = vld [vmem:[#allocation2] sm:$0xff]
        %v316 = vld [vmem:[#allocation2 + $0x8] sm:$0xff]
        %v317 = vld [vmem:[#allocation2 + $0x10] sm:$0xff]
        %v318 = vld [vmem:[#allocation2 + $0x18] sm:$0xff]
        %v319 = vld [vmem:[%s255] sm:$0xff]
        %v320 = vld [vmem:[%s255 + $0x8] sm:$0xff]
        %v321 = vld [vmem:[%s255 + $0x10] sm:$0xff]
        %v322 = vld [vmem:[%s255 + $0x18] sm:$0xff]
        %v323 = vld [vmem:[%s255 + $0x20] sm:$0xff]
        %v324 = vld [vmem:[%s255 + $0x28] sm:$0xff]
        %v325 = vld [vmem:[%s255 + $0x30] sm:$0xff]
        %v326 = vld [vmem:[%s255 + $0x38] sm:$0xff]
        %v327 = vld [vmem:[%s255 + $0x40] sm:$0xff]
        %v328 = vld [vmem:[%s255 + $0x48] sm:$0xff]
        %v329 = vld [vmem:[%s255 + $0x50] sm:$0xff]
        %v330 = vld [vmem:[%s255 + $0x58] sm:$0xff]
        %v331 = vld [vmem:[%s255 + $0x60] sm:$0xff]
        %v332 = vld [vmem:[%s255 + $0x68] sm:$0xff]
        %v333 = vld [vmem:[%s255 + $0x70] sm:$0xff]
        %v334 = vld [vmem:[%s255 + $0x78] sm:$0xff]
        %v335 = vld [vmem:[%s255 + $0x80] sm:$0xff]
        %v336 = vld [vmem:[%s255 + $0x88] sm:$0xff]
        %v337 = vld [vmem:[%s255 + $0x90] sm:$0xff]
        %v338 = vld [vmem:[%s255 + $0x98] sm:$0xff]
        %v339 = vld [vmem:[%s255 + $0xa0] sm:$0xff]
        %v340 = vld [vmem:[%s255 + $0xa8] sm:$0xff]
        %v341 = vld [vmem:[%s255 + $0xb0] sm:$0xff]
        %v342 = vld [vmem:[%s255 + $0xb8] sm:$0xff]
        %v343 = vld [vmem:[%s255 + $0xc0] sm:$0xff]
        %v344 = vld [vmem:[%s255 + $0xc8] sm:$0xff]
        %v345 = vld [vmem:[%s255 + $0xd0] sm:$0xff]
        %v346 = vld [vmem:[%s255 + $0xd8] sm:$0xff]
        %v347 = vld [vmem:[%s255 + $0xe0] sm:$0xff]
        %v348 = vld [vmem:[%s255 + $0xe8] sm:$0xff]
        %v349 = vld [vmem:[%s255 + $0xf0] sm:$0xff]
        %v350 = vld [vmem:[%s255 + $0xf8] sm:$0xff]
        %v351 = vld [vmem:[%s255 + $0x100] sm:$0xff]
        %v352 = vld [vmem:[%s255 + $0x108] sm:$0xff]
        %v353 = vld [vmem:[%s255 + $0x110] sm:$0xff]
        %v354 = vld [vmem:[%s255 + $0x118] sm:$0xff]
        %v355 = vld [vmem:[%s255 + $0x120] sm:$0xff]
        %v356 = vld [vmem:[%s255 + $0x128] sm:$0xff]
        %v357 = vld [vmem:[%s255 + $0x130] sm:$0xff]
        %v358 = vld [vmem:[%s255 + $0x138] sm:$0xff]
        %v359 = vld [vmem:[%s255 + $0x140] sm:$0xff]
        %v360 = vld [vmem:[%s255 + $0x148] sm:$0xff]
        %v361 = vld [vmem:[%s255 + $0x150] sm:$0xff]
        %v362 = vld [vmem:[%s255 + $0x158] sm:$0xff]
        %v363 = vld [vmem:[%s255 + $0x160] sm:$0xff]
        %v364 = vld [vmem:[%s255 + $0x168] sm:$0xff]
        %v365 = vld [vmem:[%s255 + $0x170] sm:$0xff]
        %v366 = vld [vmem:[%s255 + $0x178] sm:$0xff]
        %v367 = vld [vmem:[%s255 + $0x180] sm:$0xff]
        %v368 = vld [vmem:[%s255 + $0x188] sm:$0xff]
        %v369 = vld [vmem:[%s255 + $0x190] sm:$0xff]
        %v370 = vld [vmem:[%s255 + $0x198] sm:$0xff]
        %v371 = vld [vmem:[%s255 + $0x1a0] sm:$0xff]
        %v372 = vld [vmem:[%s255 + $0x1a8] sm:$0xff]
        %v373 = vld [vmem:[%s255 + $0x1b0] sm:$0xff]
        %v374 = vld [vmem:[%s255 + $0x1b8] sm:$0xff]
        %v375 = vld [vmem:[%s255 + $0x1c0] sm:$0xff]
        %v376 = vld [vmem:[%s255 + $0x1c8] sm:$0xff]
        %v377 = vld [vmem:[%s255 + $0x1d0] sm:$0xff]
        %v378 = vld [vmem:[%s255 + $0x1d8] sm:$0xff]
        %v379 = vld [vmem:[%s255 + $0x1e0] sm:$0xff]
        %v380 = vld [vmem:[%s255 + $0x1e8] sm:$0xff]
        %v381 = vld [vmem:[%s255 + $0x1f0] sm:$0xff]
        %v382 = vld [vmem:[%s255 + $0x1f8] sm:$0xff]
        %vm383 = vcmask 261120
        %v385 = vsel %vm383, %v316, 0
        %v388 = vsel %vm383, %v318, 0
        %v391 = vsel %vm383, %v320, 0
        %v394 = vsel %vm383, %v322, 0
        %v397 = vsel %vm383, %v324, 0
        %v400 = vsel %vm383, %v326, 0
        %v403 = vsel %vm383, %v328, 0
        %v406 = vsel %vm383, %v330, 0
        %v409 = vsel %vm383, %v332, 0
        %v412 = vsel %vm383, %v334, 0
        %v415 = vsel %vm383, %v336, 0
        %v418 = vsel %vm383, %v338, 0
        %v421 = vsel %vm383, %v340, 0
        %v424 = vsel %vm383, %v342, 0
        %v427 = vsel %vm383, %v344, 0
        %v430 = vsel %vm383, %v346, 0
        %v433 = vsel %vm383, %v348, 0
        %v436 = vsel %vm383, %v350, 0
        %v439 = vsel %vm383, %v352, 0
        %v442 = vsel %vm383, %v354, 0
        %v445 = vsel %vm383, %v356, 0
        %v448 = vsel %vm383, %v358, 0
        %v451 = vsel %vm383, %v360, 0
        %v454 = vsel %vm383, %v362, 0
        %v457 = vsel %vm383, %v364, 0
        %v460 = vsel %vm383, %v366, 0
        %v463 = vsel %vm383, %v368, 0
        %v466 = vsel %vm383, %v370, 0
        %v469 = vsel %vm383, %v372, 0
        %v472 = vsel %vm383, %v374, 0
        %v475 = vsel %vm383, %v376, 0
        %v478 = vsel %vm383, %v378, 0
        %v481 = vsel %vm383, %v380, 0
        %v484 = vsel %vm383, %v382, 0
        %486 = vmatprep.subr.mxu0 %v391
        %487 = vmatpush1.xpose.msra.mxu0 %v319
        %488 = vmatprep.subr.mxu0 %v394
        %489 = vmatpush1.xpose.msra.mxu0 %v321
        %490 = vmatprep.subr.mxu0 %v397
        %491 = vmatpush1.xpose.msra.mxu0 %v323
        %492 = vmatprep.subr.mxu0 %v400
        %493 = vmatpush1.xpose.msra.mxu0 %v325
        %494 = vmatprep.subr.mxu0 %v403
        %495 = vmatpush1.xpose.msra.mxu0 %v327
        %496 = vmatprep.subr.mxu0 %v406
        %497 = vmatpush1.xpose.msra.mxu0 %v329
        %498 = vmatprep.subr.mxu0 %v409
        %499 = vmatpush1.xpose.msra.mxu0 %v331
        %500 = vmatprep.subr.mxu0 %v412
        %501 = vmatpush1.xpose.msra.mxu0 %v333
        %502 = vmatprep.subr.mxu0 %v415
        %503 = vmatpush1.xpose.msra.mxu0 %v335
        %504 = vmatprep.subr.mxu0 %v418
        %505 = vmatpush1.xpose.msra.mxu0 %v337
        %506 = vmatprep.subr.mxu0 %v421
        %507 = vmatpush1.xpose.msra.mxu0 %v339
        %508 = vmatprep.subr.mxu0 %v424
        %509 = vmatpush1.xpose.msra.mxu0 %v341
        %510 = vmatprep.subr.mxu0 %v427
        %511 = vmatpush1.xpose.msra.mxu0 %v343
        %512 = vmatprep.subr.mxu0 %v430
        %513 = vmatpush1.xpose.msra.mxu0 %v345
        %514 = vmatprep.subr.mxu0 %v433
        %515 = vmatpush1.xpose.msra.mxu0 %v347
        %516 = vmatprep.subr.mxu0 %v436
        %517 = vmatpush1.xpose.msra.mxu0 %v349
        %518 = vmatprep.subr.mxu0 %v439
        %519 = vmatpush1.xpose.msra.mxu0 %v351
        %520 = vmatprep.subr.mxu0 %v442
        %521 = vmatpush1.xpose.msra.mxu0 %v353
        %522 = vmatprep.subr.mxu0 %v445
        %523 = vmatpush1.xpose.msra.mxu0 %v355
        %524 = vmatprep.subr.mxu0 %v448
        %525 = vmatpush1.xpose.msra.mxu0 %v357
        %526 = vmatprep.subr.mxu0 %v451
        %527 = vmatpush1.xpose.msra.mxu0 %v359
        %528 = vmatprep.subr.mxu0 %v454
        %529 = vmatpush1.xpose.msra.mxu0 %v361
        %530 = vmatprep.subr.mxu0 %v457
        %531 = vmatpush1.xpose.msra.mxu0 %v363
        %532 = vmatprep.subr.mxu0 %v460
        %533 = vmatpush1.xpose.msra.mxu0 %v365
        %534 = vmatprep.subr.mxu0 %v463
        %535 = vmatpush1.xpose.msra.mxu0 %v367
        %536 = vmatprep.subr.mxu0 %v466
        %537 = vmatpush1.xpose.msra.mxu0 %v369
        %538 = vmatprep.subr.mxu0 %v469
        %539 = vmatpush1.xpose.msra.mxu0 %v371
        %540 = vmatprep.subr.mxu0 %v472
        %541 = vmatpush1.xpose.msra.mxu0 %v373
        %542 = vmatprep.subr.mxu0 %v475
        %543 = vmatpush1.xpose.msra.mxu0 %v375
        %544 = vmatprep.subr.mxu0 %v478
        %545 = vmatpush1.xpose.msra.mxu0 %v377
        %546 = vmatprep.subr.mxu0 %v481
        %547 = vmatpush1.xpose.msra.mxu0 %v379
        %548 = vmatprep.subr.mxu0 %v484
        %549 = vmatpush1.xpose.msra.mxu0 %v381
        %550 = vmatprep.mubr.f32.mxu0 %v385
        %551 = vmatmul.mubr.f32.gmra.mrb[0].mxu0 %v315
        %v552 = vpop.f32.mrb[0].mxu0
        %v553 = vadd.f32 0.0, %v552
        %v554 = vpop.f32.mrb[0].mxu0
        %v555 = vadd.f32 0.0, %v554
        %556 = vmatprep.mubr.f32.mxu0 %v388
        %557 = vmatmul.mubr.f32.gmra.mrb[0].mxu0 %v317
        %v558 = vpop.f32.mrb[0].mxu0
        %v559 = vadd.f32 0.0, %v558
        %v560 = vpop.f32.mrb[0].mxu0
        %v561 = vadd.f32 0.0, %v560
        %562 = vdwg.mxu0
        %v563 = vmul.f32 %v553, %v553
        %v564 = vmul.f32 %v555, %v555
        %v565 = vmul.f32 %v559, %v559
        %v566 = vmul.f32 %v561, %v561
        %v567 = vmul.f32 %v563, 8.0
        %v568 = vmul.f32 %v564, 8.0
        %v569 = vmul.f32 %v565, 8.0
        %v570 = vmul.f32 %v566, 8.0
        %v571 = vmul.f32 %v567, %v563
        %v572 = vmul.f32 %v568, %v564
        %v573 = vmul.f32 %v569, %v565
        %v574 = vmul.f32 %v570, %v566
        %v575 = vsub.f32 %v571, %v567
        %v576 = vsub.f32 %v572, %v568
        %v577 = vsub.f32 %v573, %v569
        %v578 = vsub.f32 %v574, %v570
        %v579 = vadd.f32 %v575, 1.0
        %v580 = vadd.f32 %v576, 1.0
        %v581 = vadd.f32 %v577, 1.0
        %v582 = vadd.f32 %v578, 1.0
        %vm583 = vcmp.le.f32.partialorder %v553, 0.70710677
        %vm584 = vcmp.le.f32.partialorder %v555, 0.70710677
        %vm585 = vcmp.le.f32.partialorder %v559, 0.70710677
        %vm586 = vcmp.le.f32.partialorder %v561, 0.70710677
        %v587 = vsel %vm583, 1, 0
        %v588 = vsel %vm584, 1, 0
        %v589 = vsel %vm585, 1, 0
        %v590 = vsel %vm586, 1, 0
        %vm591 = vcmp.le.f32.partialorder %v553, 6.123234e-17
        %vm592 = vcmp.le.f32.partialorder %v555, 6.123234e-17
        %vm593 = vcmp.le.f32.partialorder %v559, 6.123234e-17
        %vm594 = vcmp.le.f32.partialorder %v561, 6.123234e-17
        %v595 = vsel %vm591, 1, 0
        %v596 = vsel %vm592, 1, 0
        %v597 = vsel %vm593, 1, 0
        %v598 = vsel %vm594, 1, 0
        %v599 = vadd.s32 %v587, %v595
        %v600 = vadd.s32 %v588, %v596
        %v601 = vadd.s32 %v589, %v597
        %v602 = vadd.s32 %v590, %v598
        %vm603 = vcmp.le.f32.partialorder %v553, -0.70710677
        %vm604 = vcmp.le.f32.partialorder %v555, -0.70710677
        %vm605 = vcmp.le.f32.partialorder %v559, -0.70710677
        %vm606 = vcmp.le.f32.partialorder %v561, -0.70710677
        %v607 = vsel %vm603, 1, 0
        %v608 = vsel %vm604, 1, 0
        %v609 = vsel %vm605, 1, 0
        %v610 = vsel %vm606, 1, 0
        %v611 = vadd.s32 %v599, %v607
        %v612 = vadd.s32 %v600, %v608
        %v613 = vadd.s32 %v601, %v609
        %v614 = vadd.s32 %v602, %v610
        %vm615 = vcmp.le.f32.partialorder %v553, -1.0
        %vm616 = vcmp.le.f32.partialorder %v555, -1.0
        %vm617 = vcmp.le.f32.partialorder %v559, -1.0
        %vm618 = vcmp.le.f32.partialorder %v561, -1.0
        %v619 = vsel %vm615, 1, 0
        %v620 = vsel %vm616, 1, 0
        %v621 = vsel %vm617, 1, 0
        %v622 = vsel %vm618, 1, 0
        %v623 = vadd.s32 %v611, %v619
        %v624 = vadd.s32 %v612, %v620
        %v625 = vadd.s32 %v613, %v621
        %v626 = vadd.s32 %v614, %v622
        %v627 = vcvt.s32.f32 %v623
        %v628 = vcvt.s32.f32 %v624
        %v629 = vcvt.s32.f32 %v625
        %v630 = vcvt.s32.f32 %v626
        %v631 = vand.u32 %v623, 1
        %v632 = vand.u32 %v624, 1
        %v633 = vand.u32 %v625, 1
        %v634 = vand.u32 %v626, 1
        %v635 = vcvt.s32.f32 %v631
        %v636 = vcvt.s32.f32 %v632
        %v637 = vcvt.s32.f32 %v633
        %v638 = vcvt.s32.f32 %v634
        %v639 = vmul.f32 %v635, 2.0
        %v640 = vmul.f32 %v636, 2.0
        %v641 = vmul.f32 %v637, 2.0
        %v642 = vmul.f32 %v638, 2.0
        %v643 = vsub.f32 1.0, %v639
        %v644 = vsub.f32 1.0, %v640
        %v645 = vsub.f32 1.0, %v641
        %v646 = vsub.f32 1.0, %v642
        %v647 = vmul.f32 %v643, %v579
        %v648 = vmul.f32 %v644, %v580
        %v649 = vmul.f32 %v645, %v581
        %v650 = vmul.f32 %v646, %v582
        %v651 = vmul.f32 %v627, 2.0
        %v652 = vmul.f32 %v628, 2.0
        %v653 = vmul.f32 %v629, 2.0
        %v654 = vmul.f32 %v630, 2.0
        %v655 = vsub.f32 %v647, %v651
        %v656 = vsub.f32 %v648, %v652
        %v657 = vsub.f32 %v649, %v653
        %v658 = vsub.f32 %v650, %v654
        %s659 = sld [smem:[#allocation4]]
        %v660 = vlaneseq
        %v661 = vand.u32 %v660, 127
        %v662 = vadd.s32 %v661, 128
        %s663 = smul.u32 %s24, 256
        %v664 = vstv %s663
        %v665 = vadd.s32 %v661, %v664
        %v666 = vadd.s32 %v662, %v664
        %v667 = vld [vmem:[%s261] sm:$0xff]
        %v668 = vld [vmem:[%s261 + $0x8] sm:$0xff]
        %669 = vset.pattern.permute.xlu0 0
        %670 = vperm.xlu0 %669, %v667
        %v671 = vpop.permute.xlu0 %670
        %672 = vset.pattern.permute.xlu0 0
        %673 = vperm.xlu0 %672, %v668
        %v674 = vpop.permute.xlu0 %673
        %vm675 = vcmp.eq.s32.totalorder %v665, %v671
        %vm676 = vcmp.eq.s32.totalorder %v666, %v671
        %vm677 = vcmp.eq.s32.totalorder %v665, %v674
        %vm678 = vcmp.eq.s32.totalorder %v666, %v674
        %v679 = vstv %s659
        %v680 = vmul.f32 %v655, %v679
        %v681 = vmul.f32 %v656, %v679
        %v682 = vmul.f32 %v657, %v679
        %v683 = vmul.f32 %v658, %v679
        %s684 = ssub.f32 1.0, %s659
        %v685 = vstv %s684
        %v686 = vmul.f32 %v553, %v685
        %v687 = vmul.f32 %v555, %v685
        %v688 = vmul.f32 %v559, %v685
        %v689 = vmul.f32 %v561, %v685
        %v690 = vadd.f32 %v680, %v686
        %v691 = vadd.f32 %v681, %v687
        %v692 = vadd.f32 %v682, %v688
        %v693 = vadd.f32 %v683, %v689
        %v694 = vsel %vm675, %v690, %v553
        %v695 = vsel %vm676, %v691, %v555
        %v696 = vsel %vm677, %v692, %v559
        %v697 = vsel %vm678, %v693, %v561
        %v698 = vld [vmem:[#allocation3] sm:$0xff]
        %v699 = vld [vmem:[#allocation3 + $0x8] sm:$0xff]
        %701 = vset.pattern.permute.xlu0 0
        %702 = vperm.xlu0 %701, %v698
        %v703 = vpop.permute.xlu0 %702
        %706 = vset.pattern.permute.xlu0 0
        %707 = vperm.xlu0 %706, %v699
        %v708 = vpop.permute.xlu0 %707
        %v710 = vmul.f32 %v694, %v703
        %v711 = vmul.f32 %v695, %v703
        %v712 = vmul.f32 %v696, %v708
        %v713 = vmul.f32 %v697, %v708
        %714 = vst [vmem:[%s242] sm:$0xff] %v710
        %715 = vst [vmem:[%s242 + $0x8] sm:$0xff] %v711
        %716 = vst [vmem:[%s242 + $0x10] sm:$0xff] %v712
        %717 = vst [vmem:[%s242 + $0x18] sm:$0xff] %v713
        %s718 = sand.u32 %s140, 1
        %s719 = scalar_lea.sflag [#allocation6], %s718
        %s720 = sand.u32 %s140, 1
        %s721 = smul.addr %s720, 32
        %s722 = scalar_lea.vmem [#allocation5], %s721
        // Predicated region
        $region41: #{tpu_custom_call.1} parent=35 // pred_check
          %p723 = pneg %p150
        $region42: #{tpu_custom_call.1} parent=35 // pred_check_branch
          %725 = sbr.rel (%p723) target = $region44
        $region43: #{tpu_custom_call.1} parent=35 // pred_region
          %s726 = smul.u32 2, %s23
          %s727 = smul.u32 2, %s24
          %s729 = ssub.s32 512, 512
          %730 = vsyncadd %s719, %s729
          %s731 = smul.addr %s726, 8
          %s732 = sadd.s32 %s727, %s731
          %s733 = smul.addr %s732, 128
          %s734 = scalar_lea.hbm %s4, %s733
          %s735 = sshll.u32 %s722, 4
          %s736 = int_to_ptr.vmem [resolvable:$true] %s735
          %741 = dma.vmem_to_hbm [thread:$0]  %s736, 512, %s734, %s719, 256, 1024, 16
        $region44: #{tpu_custom_call.1} parent=35 // pred_fallthru
          _
      $region36: #{tpu_custom_call.1} parent=5 // pred_fallthru
        _
      %p742 = scmp.le.s32.totalorder 2, %s14
      // Predicated region
      $region45: #{tpu_custom_call.1} parent=5 // pred_check
        %p743 = pneg %p742
      $region46: #{tpu_custom_call.1} parent=5 // pred_check_branch
        %745 = sbr.rel (%p743) target = $region48
      $region47: #{tpu_custom_call.1} parent=5 // pred_region
        %s746 = ssub.s32 %s14, 2
        // Predicated region
        $region49: #{tpu_custom_call.1} parent=47 // pred_check
          %p747 = pneg %p156
        $region50: #{tpu_custom_call.1} parent=47 // pred_check_branch
          %749 = sbr.rel (%p747) target = $region52
        $region51: #{tpu_custom_call.1} parent=47 // pred_region
          %s750 = sand.u32 %s141, 1
          %s751 = scalar_lea.sflag [#allocation6], %s750
          %s752 = sand.u32 %s141, 1
          %s753 = smul.addr %s752, 32
          %s754 = scalar_lea.vmem [#allocation5], %s753
          %755 = dma.done %s751, 512
        $region52: #{tpu_custom_call.1} parent=47 // pred_fallthru
          _
      $region48: #{tpu_custom_call.1} parent=5 // pred_fallthru
        _
    $region6: #{tpu_custom_call.1} parent=1 // loop_footer
      %s18 = sadd.s32 1, %s14
    $region7: #{tpu_custom_call.1} parent=1 // loop_footer_branch
      %13 = sbr.rel target = $region3
    $region8: #{tpu_custom_call.1} parent=1 // loop_exit
      _
    %756 = vsyncpa [#allocation6], 1
    %s757 = scalar_lea.sflag [#allocation6], 1
    %758 = vsyncpa %s757, 1

</llo_original>
